<compile_context>
chip_gen: v6e
topology: v6e:2x2x1
jax: 0.10.0
libtpu: 0.0.40
codegen_flags: <defaults>
</compile_context>

<pallas_src>
import jax
import jax.numpy as jnp
from jax.experimental import pallas as pl
from jax.experimental.pallas import tpu as pltpu

NEG_SLOPE = 0.01   # PyTorch nn.LeakyReLU default
BN_EPS = 1e-5      # PyTorch nn.BatchNorm1d default
_MAX_TILE = 4096   # per-tile f32 activations ~2.5 MB << scoped VMEM on v5e/v6e/v7x


def _mlp_kernel(x_ref, cx_ref, we_ref, w1x_ref, w1e_ref, w2_ref, w3_ref, b_ref, o_ref):
    f32 = jnp.float32
    b = b_ref[...]                                    # (8, 100) packed biases

    # emb_layer + tanh:  (tb, 7) @ (7, 7)
    emb = jnp.tanh(
        jnp.dot(cx_ref[...], we_ref[...], preferred_element_type=f32) + b[2:3, 0:7]
    )                                                 # (tb, 7)

    # layer1 (bn1 pre-folded into the weights/bias); concat([x, emb]) expressed as
    # a split matmul so no in-kernel concatenation is needed.
    a1 = (jnp.dot(x_ref[...], w1x_ref[...], preferred_element_type=f32)
          + jnp.dot(emb, w1e_ref[...], preferred_element_type=f32)
          + b[0:1, 0:100])                            # (tb, 100)
    a1 = jnp.where(a1 >= 0, a1, NEG_SLOPE * a1)       # LeakyReLU (Dropout = identity)

    # layer2 + LeakyReLU (bn2 is unused by the reference forward)
    a2 = jnp.dot(a1, w2_ref[...], preferred_element_type=f32) + b[1:2, 0:40]
    a2 = jnp.where(a2 >= 0, a2, NEG_SLOPE * a2)       # (tb, 40)

    # layer3 -> single output column
    o_ref[...] = jnp.dot(a2, w3_ref[...], preferred_element_type=f32) + b[3:4, 0:1]


def _round_up(n, m):
    return ((n + m - 1) // m) * m


def _choose_tiling(B):
    """Return (Bp, tb).  1 tile for small batches; exactly 2 tiles when there is
    enough work (v7x: one tile per TensorCore; v5e/v6e: one extra cheap step);
    tile size capped so huge batches still fit comfortably in VMEM."""
    if B <= 256:
        tb = _round_up(B, 8)
        return tb, tb
    tb = min(_round_up(pl.cdiv(B, 2), 128), _MAX_TILE)
    return _round_up(B, tb), tb


def nn_regressor_forward(x, cat_x, params):
    """x: (B, 7), cat_x: (B, 7) -> (B, 1) float32 (eval-mode forward)."""
    B = x.shape[0]
    Bp, tb = _choose_tiling(B)
    f32 = jnp.float32

    x = x.astype(f32)
    cat_x = cat_x.astype(f32)
    if Bp != B:  # pad only the batch dim (no feature packing / transpose round trips)
        x = jnp.zeros((Bp, 7), f32).at[:B].set(x)
        cat_x = jnp.zeros((Bp, 7), f32).at[:B].set(cat_x)

    # ---- fold BatchNorm1d (eval) into layer1 ----
    inv_std = 1.0 / jnp.sqrt(params["bn1_var"] + BN_EPS)
    scale = params["bn1_gamma"] * inv_std                  # (100,)
    shift = params["bn1_beta"] - params["bn1_mean"] * scale
    w1f = params["w1"] * scale[None, :]                    # (14, 100)
    b1f = params["b1"] * scale + shift                     # (100,)

    we = params["we"]                                      # (7, 7)
    w1x = w1f[0:7, :]                                      # (7, 100)  x rows of concat
    w1e = w1f[7:14, :]                                     # (7, 100)  emb rows of concat
    w2 = params["w2"]                                      # (100, 40)
    w3 = params["w3"]                                      # (40, 1)

    # ---- one small packed bias array (single constant DMA) ----
    bias = jnp.zeros((8, 100), f32)
    bias = bias.at[0, :100].set(b1f)                       # layer1 (bn folded)
    bias = bias.at[1, :40].set(params["b2"])               # layer2
    bias = bias.at[2, :7].set(params["be"])                # emb layer
    bias = bias.at[3, 0].set(params["b3"][0])              # layer3

    full = lambda a: pl.BlockSpec(a.shape, lambda i: (0, 0))

    out = pl.pallas_call(
        _mlp_kernel,
        out_shape=jax.ShapeDtypeStruct((Bp, 1), f32),
        grid=(Bp // tb,),
        in_specs=[
            pl.BlockSpec((tb, 7), lambda i: (i, 0)),       # x
            pl.BlockSpec((tb, 7), lambda i: (i, 0)),       # cat_x
            full(we), full(w1x), full(w1e), full(w2), full(w3), full(bias),
        ],
        out_specs=pl.BlockSpec((tb, 1), lambda i: (i, 0)),
        compiler_params=pltpu.CompilerParams(
            dimension_semantics=("parallel",)),
    )(x, cat_x, we, w1x, w1e, w2, w3, bias)

    return out[:B]                                         # (B, 1)


def init_params(key):
    """Deterministic PyTorch-style init (uniform(-1/sqrt(fan_in), 1/sqrt(fan_in)))."""
    def linear(k, fan_in, fan_out):
        kw, kb = jax.random.split(k)
        bound = 1.0 / jnp.sqrt(fan_in)
        # stored (in, out) so the reference computes x @ W + b
        w = jax.random.uniform(kw, (fan_in, fan_out), jnp.float32, -bound, bound)
        b = jax.random.uniform(kb, (fan_out,), jnp.float32, -bound, bound)
        return w, b

    k_emb, k1, k2, k3 = jax.random.split(key, 4)
    we, be = linear(k_emb, 7, 7)
    w1, b1 = linear(k1, 14, 100)
    w2, b2 = linear(k2, 100, 40)
    w3, b3 = linear(k3, 40, 1)
    return dict(
        we=we, be=be,
        w1=w1, b1=b1,
        bn1_gamma=jnp.ones((100,), jnp.float32),
        bn1_beta=jnp.zeros((100,), jnp.float32),
        bn1_mean=jnp.zeros((100,), jnp.float32),
        bn1_var=jnp.ones((100,), jnp.float32),
        w2=w2, b2=b2,
        w3=w3, b3=b3,
    )


def _reference_forward(x, cat_x, p):
    """Plain-JAX reference matching the PyTorch module (eval mode)."""
    h = jnp.tanh(cat_x @ p["we"] + p["be"])
    z = jnp.concatenate([x, h], axis=1)
    a1 = z @ p["w1"] + p["b1"]
    a1 = (a1 - p["bn1_mean"]) / jnp.sqrt(p["bn1_var"] + BN_EPS) * p["bn1_gamma"] + p["bn1_beta"]
    a1 = jnp.where(a1 >= 0, a1, NEG_SLOPE * a1)
    a2 = a1 @ p["w2"] + p["b2"]
    a2 = jnp.where(a2 >= 0, a2, NEG_SLOPE * a2)
    return a2 @ p["w3"] + p["b3"]


if __name__ == "__main__":
    key = jax.random.PRNGKey(0)
    k_params, k_data = jax.random.split(key)
    params = init_params(k_params)

    # small batch (single tiny tile) and a medium batch (exactly 2 tiles)
    for B in (2, 300):
        kx, kc = jax.random.split(jax.random.fold_in(k_data, B))
        x = jax.random.normal(kx, (B, 7), jnp.float32)
        cat_x = jax.random.normal(kc, (B, 7), jnp.float32)

        out = jax.block_until_ready(nn_regressor_forward(x, cat_x, params))
        ref = _reference_forward(x, cat_x, params)

        assert out.shape == (B, 1)
        assert jnp.allclose(out, ref, atol=1e-4, rtol=1e-4), (B, out[:4], ref[:4])

    # TODO(synk): Dropout / BatchNorm training-mode statistics are not implemented
    # (eval-mode forward only), matching deterministic inference semantics.
    print("KERNEL_OK")
</pallas_src>

<mosaic_0001>
module attributes {stable_mosaic.version = 11 : i64} {
  func.func @_mlp_kernel(%arg0: i32, %arg1: memref<8x7xf32, #tpu.memory_space<vmem>>, %arg2: memref<8x7xf32, #tpu.memory_space<vmem>>, %arg3: memref<7x7xf32, #tpu.memory_space<vmem>>, %arg4: memref<7x100xf32, #tpu.memory_space<vmem>>, %arg5: memref<7x100xf32, #tpu.memory_space<vmem>>, %arg6: memref<100x40xf32, #tpu.memory_space<vmem>>, %arg7: memref<40x1xf32, #tpu.memory_space<vmem>>, %arg8: memref<8x100xf32, #tpu.memory_space<vmem>>, %arg9: memref<8x1xf32, #tpu.memory_space<vmem>>) attributes {dimension_semantics = [#tpu.dimension_semantics<parallel>], iteration_bounds = array<i64: 1>, scalar_prefetch = 0 : i64, scratch_operands = 0 : i64, tpu.core_type = #tpu.core_type<tc>, window_params = [{transform_indices = @transform_0, window_bounds = array<i64: 8, 7>}, {transform_indices = @transform_1, window_bounds = array<i64: 8, 7>}, {pipeline_mode = #tpu.pipeline_mode<synchronous>, transform_indices = @transform_2, window_bounds = array<i64: 7, 7>}, {pipeline_mode = #tpu.pipeline_mode<synchronous>, transform_indices = @transform_3, window_bounds = array<i64: 7, 100>}, {pipeline_mode = #tpu.pipeline_mode<synchronous>, transform_indices = @transform_4, window_bounds = array<i64: 7, 100>}, {pipeline_mode = #tpu.pipeline_mode<synchronous>, transform_indices = @transform_5, window_bounds = array<i64: 100, 40>}, {pipeline_mode = #tpu.pipeline_mode<synchronous>, transform_indices = @transform_6, window_bounds = array<i64: 40, 1>}, {pipeline_mode = #tpu.pipeline_mode<synchronous>, transform_indices = @transform_7, window_bounds = array<i64: 8, 100>}, {transform_indices = @transform_8, window_bounds = array<i64: 8, 1>}]} {
    %c0 = arith.constant 0 : index
    %c0_0 = arith.constant 0 : index
    %0 = vector.load %arg8[%c0, %c0_0] : memref<8x100xf32, #tpu.memory_space<vmem>>, vector<8x100xf32>
    %c0_1 = arith.constant 0 : index
    %c0_2 = arith.constant 0 : index
    %1 = vector.load %arg2[%c0_1, %c0_2] : memref<8x7xf32, #tpu.memory_space<vmem>>, vector<8x7xf32>
    %c0_3 = arith.constant 0 : index
    %c0_4 = arith.constant 0 : index
    %2 = vector.load %arg3[%c0_3, %c0_4] : memref<7x7xf32, #tpu.memory_space<vmem>>, vector<7x7xf32>
    %cst = arith.constant dense<0.000000e+00> : vector<8x7xf32>
    %3 = tpu.matmul %1, %2, %cst {dimension_numbers = #tpu.dot_dimension_numbers<[1], [0], [0], [1], [0, 0, 1, 1], [], []>} : vector<8x7xf32>, vector<7x7xf32>, vector<8x7xf32> -> vector<8x7xf32>
    %4 = vector.extract_strided_slice %0 {offsets = [2, 0], sizes = [1, 7], strides = [1, 1]} : vector<8x100xf32> to vector<1x7xf32>
    %5 = vector.broadcast %4 : vector<1x7xf32> to vector<8x7xf32>
    %6 = arith.addf %3, %5 : vector<8x7xf32>
    %7 = math.tanh %6 : vector<8x7xf32>
    %c0_5 = arith.constant 0 : index
    %c0_6 = arith.constant 0 : index
    %8 = vector.load %arg1[%c0_5, %c0_6] : memref<8x7xf32, #tpu.memory_space<vmem>>, vector<8x7xf32>
    %c0_7 = arith.constant 0 : index
    %c0_8 = arith.constant 0 : index
    %9 = vector.load %arg4[%c0_7, %c0_8] : memref<7x100xf32, #tpu.memory_space<vmem>>, vector<7x100xf32>
    %cst_9 = arith.constant dense<0.000000e+00> : vector<8x100xf32>
    %10 = tpu.matmul %8, %9, %cst_9 {dimension_numbers = #tpu.dot_dimension_numbers<[1], [0], [0], [1], [0, 0, 1, 1], [], []>} : vector<8x7xf32>, vector<7x100xf32>, vector<8x100xf32> -> vector<8x100xf32>
    %c0_10 = arith.constant 0 : index
    %c0_11 = arith.constant 0 : index
    %11 = vector.load %arg5[%c0_10, %c0_11] : memref<7x100xf32, #tpu.memory_space<vmem>>, vector<7x100xf32>
    %cst_12 = arith.constant dense<0.000000e+00> : vector<8x100xf32>
    %12 = tpu.matmul %7, %11, %cst_12 {dimension_numbers = #tpu.dot_dimension_numbers<[1], [0], [0], [1], [0, 0, 1, 1], [], []>} : vector<8x7xf32>, vector<7x100xf32>, vector<8x100xf32> -> vector<8x100xf32>
    %13 = arith.addf %10, %12 : vector<8x100xf32>
    %14 = vector.extract_strided_slice %0 {offsets = [0, 0], sizes = [1, 100], strides = [1, 1]} : vector<8x100xf32> to vector<1x100xf32>
    %15 = vector.broadcast %14 : vector<1x100xf32> to vector<8x100xf32>
    %16 = arith.addf %13, %15 : vector<8x100xf32>
    %cst_13 = arith.constant 0.000000e+00 : f32
    %17 = vector.broadcast %cst_13 : f32 to vector<8x100xf32>
    %18 = arith.cmpf oge, %16, %17 : vector<8x100xf32>
    %cst_14 = arith.constant 0.00999999977 : f32
    %19 = vector.broadcast %cst_14 : f32 to vector<8x100xf32>
    %20 = arith.mulf %19, %16 : vector<8x100xf32>
    %21 = arith.select %18, %16, %20 : vector<8x100xi1>, vector<8x100xf32>
    %c0_15 = arith.constant 0 : index
    %c0_16 = arith.constant 0 : index
    %22 = vector.load %arg6[%c0_15, %c0_16] : memref<100x40xf32, #tpu.memory_space<vmem>>, vector<100x40xf32>
    %cst_17 = arith.constant dense<0.000000e+00> : vector<8x40xf32>
    %23 = tpu.matmul %21, %22, %cst_17 {dimension_numbers = #tpu.dot_dimension_numbers<[1], [0], [0], [1], [0, 0, 1, 1], [], []>} : vector<8x100xf32>, vector<100x40xf32>, vector<8x40xf32> -> vector<8x40xf32>
    %24 = vector.extract_strided_slice %0 {offsets = [1, 0], sizes = [1, 40], strides = [1, 1]} : vector<8x100xf32> to vector<1x40xf32>
    %25 = vector.broadcast %24 : vector<1x40xf32> to vector<8x40xf32>
    %26 = arith.addf %23, %25 : vector<8x40xf32>
    %cst_18 = arith.constant 0.000000e+00 : f32
    %27 = vector.broadcast %cst_18 : f32 to vector<8x40xf32>
    %28 = arith.cmpf oge, %26, %27 : vector<8x40xf32>
    %cst_19 = arith.constant 0.00999999977 : f32
    %29 = vector.broadcast %cst_19 : f32 to vector<8x40xf32>
    %30 = arith.mulf %29, %26 : vector<8x40xf32>
    %31 = arith.select %28, %26, %30 : vector<8x40xi1>, vector<8x40xf32>
    %c0_20 = arith.constant 0 : index
    %c0_21 = arith.constant 0 : index
    %32 = vector.load %arg7[%c0_20, %c0_21] : memref<40x1xf32, #tpu.memory_space<vmem>>, vector<40x1xf32>
    %cst_22 = arith.constant dense<0.000000e+00> : vector<8x1xf32>
    %33 = tpu.matmul %31, %32, %cst_22 {dimension_numbers = #tpu.dot_dimension_numbers<[1], [0], [0], [1], [0, 0, 1, 1], [], []>} : vector<8x40xf32>, vector<40x1xf32>, vector<8x1xf32> -> vector<8x1xf32>
    %34 = vector.extract_strided_slice %0 {offsets = [3, 0], sizes = [1, 1], strides = [1, 1]} : vector<8x100xf32> to vector<1x1xf32>
    %35 = vector.broadcast %34 : vector<1x1xf32> to vector<8x1xf32>
    %36 = arith.addf %33, %35 : vector<8x1xf32>
    %c0_23 = arith.constant 0 : index
    %c0_24 = arith.constant 0 : index
    %37 = vector.load %arg9[%c0_23, %c0_24] : memref<8x1xf32, #tpu.memory_space<vmem>>, vector<8x1xf32>
    tpu.vector_store %arg9[%c0_23, %c0_24], %36 {strides = array<i32>} : memref<8x1xf32, #tpu.memory_space<vmem>>, vector<8x1xf32>,
    return
  }
  func.func @transform_0(%arg0: i32) -> (i32, i32) {
    %c0_i32 = arith.constant 0 : i32
    %c0_i32_0 = arith.constant 0 : i32
    return %arg0, %c0_i32 : i32, i32
  }
  func.func @transform_1(%arg0: i32) -> (i32, i32) {
    %c0_i32 = arith.constant 0 : i32
    %c0_i32_0 = arith.constant 0 : i32
    return %arg0, %c0_i32 : i32, i32
  }
  func.func @transform_2(%arg0: i32) -> (i32, i32) {
    %c0_i32 = arith.constant 0 : i32
    %c0_i32_0 = arith.constant 0 : i32
    %c0_i32_1 = arith.constant 0 : i32
    return %c0_i32, %c0_i32_0 : i32, i32
  }
  func.func @transform_3(%arg0: i32) -> (i32, i32) {
    %c0_i32 = arith.constant 0 : i32
    %c0_i32_0 = arith.constant 0 : i32
    %c0_i32_1 = arith.constant 0 : i32
    return %c0_i32, %c0_i32_0 : i32, i32
  }
  func.func @transform_4(%arg0: i32) -> (i32, i32) {
    %c0_i32 = arith.constant 0 : i32
    %c0_i32_0 = arith.constant 0 : i32
    %c0_i32_1 = arith.constant 0 : i32
    return %c0_i32, %c0_i32_0 : i32, i32
  }
  func.func @transform_5(%arg0: i32) -> (i32, i32) {
    %c0_i32 = arith.constant 0 : i32
    %c0_i32_0 = arith.constant 0 : i32
    %c0_i32_1 = arith.constant 0 : i32
    return %c0_i32, %c0_i32_0 : i32, i32
  }
  func.func @transform_6(%arg0: i32) -> (i32, i32) {
    %c0_i32 = arith.constant 0 : i32
    %c0_i32_0 = arith.constant 0 : i32
    %c0_i32_1 = arith.constant 0 : i32
    return %c0_i32, %c0_i32_0 : i32, i32
  }
  func.func @transform_7(%arg0: i32) -> (i32, i32) {
    %c0_i32 = arith.constant 0 : i32
    %c0_i32_0 = arith.constant 0 : i32
    %c0_i32_1 = arith.constant 0 : i32
    return %c0_i32, %c0_i32_0 : i32, i32
  }
  func.func @transform_8(%arg0: i32) -> (i32, i32) {
    %c0_i32 = arith.constant 0 : i32
    %c0_i32_0 = arith.constant 0 : i32
    return %arg0, %c0_i32 : i32, i32
  }
}

</mosaic_0001>

<llo_original>
// kernel: tpu_custom_call.1
$region0: #{tpu_custom_call.1}
  #allocation0 [shape = 'u32[]', space=smem, size = 0x4, offset = 0x4, fixed_abs, tag = 'smem constant byte address 0x4 - core index']
  #allocation1 [shape = 'u32[144,128]{1,0:T(1,128)}', space=vmem, size = 0x12000, scoped, tag = 'internal scratch']
  %s0 = inlined_call_operand.vmem [shape: f32[8,7], index: 0, kind: input, shape index: {}]
  %s1 = inlined_call_operand.vmem [shape: f32[8,7], index: 1, kind: input, shape index: {}]
  %s2 = inlined_call_operand.vmem [shape: f32[7,7], index: 2, kind: input, shape index: {}]
  %s3 = inlined_call_operand.vmem [shape: f32[7,100], index: 3, kind: input, shape index: {}]
  %s4 = inlined_call_operand.vmem [shape: f32[7,100], index: 4, kind: input, shape index: {}]
  %s5 = inlined_call_operand.vmem [shape: f32[100,40], index: 5, kind: input, shape index: {}]
  %s6 = inlined_call_operand.vmem [shape: f32[40,1], index: 6, kind: input, shape index: {}]
  %s7 = inlined_call_operand.vmem [shape: f32[8,100], index: 7, kind: input, shape index: {}]
  %s8 = inlined_call_operand.vmem [shape: f32[8,1], index: 8, kind: output, shape index: {}]
  %s9 = sld [smem:[#allocation0]]
  $region42: #{tpu_custom_call.1} parent=0
    _
  %s11 = ssub.s32 1, %s9
  %s12 = scalar_select 0, %s11, %s9
  // Predicated region
  $region2: #{tpu_custom_call.1} parent=0 // pred_check
    _
  $region3: #{tpu_custom_call.1} parent=0 // pred_check_branch
    %14 = sbr.rel (0) target = $region5
  $region4: #{tpu_custom_call.1} parent=0 // pred_region
    _
  $region5: #{tpu_custom_call.1} parent=0 // pred_fallthru
    _
  // Predicated region
  $region6: #{tpu_custom_call.1} parent=0 // pred_check
    _
  $region7: #{tpu_custom_call.1} parent=0 // pred_check_branch
    %16 = sbr.rel (0) target = $region9
  $region8: #{tpu_custom_call.1} parent=0 // pred_region
    _
  $region9: #{tpu_custom_call.1} parent=0 // pred_fallthru
    _
  // Predicated region
  $region10: #{tpu_custom_call.1} parent=0 // pred_check
    _
  $region11: #{tpu_custom_call.1} parent=0 // pred_check_branch
    %18 = sbr.rel (0) target = $region13
  $region12: #{tpu_custom_call.1} parent=0 // pred_region
    _
  $region13: #{tpu_custom_call.1} parent=0 // pred_fallthru
    _
  // Predicated region
  $region14: #{tpu_custom_call.1} parent=0 // pred_check
    _
  $region15: #{tpu_custom_call.1} parent=0 // pred_check_branch
    %20 = sbr.rel (0) target = $region17
  $region16: #{tpu_custom_call.1} parent=0 // pred_region
    _
  $region17: #{tpu_custom_call.1} parent=0 // pred_fallthru
    _
  // Predicated region
  $region18: #{tpu_custom_call.1} parent=0 // pred_check
    _
  $region19: #{tpu_custom_call.1} parent=0 // pred_check_branch
    %22 = sbr.rel (0) target = $region21
  $region20: #{tpu_custom_call.1} parent=0 // pred_region
    _
  $region21: #{tpu_custom_call.1} parent=0 // pred_fallthru
    _
  // Predicated region
  $region22: #{tpu_custom_call.1} parent=0 // pred_check
    _
  $region23: #{tpu_custom_call.1} parent=0 // pred_check_branch
    %24 = sbr.rel (0) target = $region25
  $region24: #{tpu_custom_call.1} parent=0 // pred_region
    _
  $region25: #{tpu_custom_call.1} parent=0 // pred_fallthru
    _
  // Predicated region
  $region26: #{tpu_custom_call.1} parent=0 // pred_check
    _
  $region27: #{tpu_custom_call.1} parent=0 // pred_check_branch
    %26 = sbr.rel (0) target = $region29
  $region28: #{tpu_custom_call.1} parent=0 // pred_region
    _
  $region29: #{tpu_custom_call.1} parent=0 // pred_fallthru
    _
  // Predicated region
  $region30: #{tpu_custom_call.1} parent=0 // pred_check
    _
  $region31: #{tpu_custom_call.1} parent=0 // pred_check_branch
    %28 = sbr.rel (0) target = $region33
  $region32: #{tpu_custom_call.1} parent=0 // pred_region
    _
  $region33: #{tpu_custom_call.1} parent=0 // pred_fallthru
    _
  %v29 = vld [vmem:[%s7] sm:$0xff]
  %v30 = vld [vmem:[%s1] sm:$0xff]
  %v31 = vld [vmem:[%s2] sm:$0x7f]
  %v32 = vlaneseq
  %v33 = vshrl.u32 %v32, 7
  %v34 = vsub.s32 2, %v33
  %v35 = vrot.slane %v29, %v34
  %vm36 = vcmask 56320
  %v38 = vsel %vm36, %v30, 0
  %vm40 = vcmask 1046528
  %v42 = vsel %vm40, %v31, 0
  %44 = vmatprep.subr.mxu0 0.0
  %45 = vmatpush1.msra.mxu0 0.0
  %46 = vmatprep.subr.mxu0 0.0
  %47 = vmatpush1.msra.mxu0 0.0
  %48 = vmatprep.subr.mxu0 0.0
  %49 = vmatpush1.msra.mxu0 0.0
  %50 = vmatprep.subr.mxu0 0.0
  %51 = vmatpush1.msra.mxu0 0.0
  %52 = vmatprep.subr.mxu0 0.0
  %53 = vmatpush1.msra.mxu0 0.0
  %54 = vmatprep.subr.mxu0 0.0
  %55 = vmatpush1.msra.mxu0 0.0
  %56 = vmatprep.subr.mxu0 0.0
  %57 = vmatpush1.msra.mxu0 0.0
  %58 = vmatprep.subr.mxu0 0.0
  %59 = vmatpush1.msra.mxu0 0.0
  %60 = vmatprep.subr.mxu0 0.0
  %61 = vmatpush1.msra.mxu0 0.0
  %62 = vmatprep.subr.mxu0 0.0
  %63 = vmatpush1.msra.mxu0 0.0
  %64 = vmatprep.subr.mxu0 0.0
  %65 = vmatpush1.msra.mxu0 0.0
  %66 = vmatprep.subr.mxu0 0.0
  %67 = vmatpush1.msra.mxu0 0.0
  %68 = vmatprep.subr.mxu0 0.0
  %69 = vmatpush1.msra.mxu0 0.0
  %70 = vmatprep.subr.mxu0 0.0
  %71 = vmatpush1.msra.mxu0 0.0
  %72 = vmatprep.subr.mxu0 0.0
  %73 = vmatpush1.msra.mxu0 0.0
  %74 = vmatprep.subr.mxu0 0.0
  %75 = vmatpush1.msra.mxu0 %v42
  %76 = vmatprep.subr.mxu0 0.0
  %77 = vmatpush2.msra.mxu0 0.0
  %78 = vmatprep.subr.mxu0 0.0
  %79 = vmatpush2.msra.mxu0 0.0
  %80 = vmatprep.subr.mxu0 0.0
  %81 = vmatpush2.msra.mxu0 0.0
  %82 = vmatprep.subr.mxu0 0.0
  %83 = vmatpush2.msra.mxu0 0.0
  %84 = vmatprep.subr.mxu0 0.0
  %85 = vmatpush2.msra.mxu0 0.0
  %86 = vmatprep.subr.mxu0 0.0
  %87 = vmatpush2.msra.mxu0 0.0
  %88 = vmatprep.subr.mxu0 0.0
  %89 = vmatpush2.msra.mxu0 0.0
  %90 = vmatprep.subr.mxu0 0.0
  %91 = vmatpush2.msra.mxu0 0.0
  %92 = vmatprep.subr.mxu0 0.0
  %93 = vmatpush2.msra.mxu0 0.0
  %94 = vmatprep.subr.mxu0 0.0
  %95 = vmatpush2.msra.mxu0 0.0
  %96 = vmatprep.subr.mxu0 0.0
  %97 = vmatpush2.msra.mxu0 0.0
  %98 = vmatprep.subr.mxu0 0.0
  %99 = vmatpush2.msra.mxu0 0.0
  %100 = vmatprep.subr.mxu0 0.0
  %101 = vmatpush2.msra.mxu0 0.0
  %102 = vmatprep.subr.mxu0 0.0
  %103 = vmatpush2.msra.mxu0 0.0
  %104 = vmatprep.subr.mxu0 0.0
  %105 = vmatpush2.msra.mxu0 0.0
  %106 = vmatprep.subr.mxu0 0.0
  %107 = vmatpush2.msra.mxu0 0.0
  %108 = vmatprep.mubr.f32.mxu0 0.0
  %109 = vmatmul.mubr.f32.gmra.mxu0 %v38
  %v110 = vpop.f32.mrf.mxu0
  %v111 = vadd.f32 %v35, %v110
  %v112 = vpop.f32.mrf.mxu0
  %113 = vdwg.mxu0
  %v114 = vtanh.pop %v111
  %v115 = vld [vmem:[%s0] sm:$0xff]
  %v116 = vld [vmem:[%s3] sm:$0x7f]
  %v117 = vld [vmem:[%s4] sm:$0x7f]
  %v119 = vsel %vm36, %v114, 0
  %v122 = vsel %vm40, %v117, 0
  %124 = vmatprep.subr.mxu0 0.0
  %125 = vmatpush1.msra.mxu0 0.0
  %126 = vmatprep.subr.mxu0 0.0
  %127 = vmatpush1.msra.mxu0 0.0
  %128 = vmatprep.subr.mxu0 0.0
  %129 = vmatpush1.msra.mxu0 0.0
  %130 = vmatprep.subr.mxu0 0.0
  %131 = vmatpush1.msra.mxu0 0.0
  %132 = vmatprep.subr.mxu0 0.0
  %133 = vmatpush1.msra.mxu0 0.0
  %134 = vmatprep.subr.mxu0 0.0
  %135 = vmatpush1.msra.mxu0 0.0
  %136 = vmatprep.subr.mxu0 0.0
  %137 = vmatpush1.msra.mxu0 0.0
  %138 = vmatprep.subr.mxu0 0.0
  %139 = vmatpush1.msra.mxu0 0.0
  %140 = vmatprep.subr.mxu0 0.0
  %141 = vmatpush1.msra.mxu0 0.0
  %142 = vmatprep.subr.mxu0 0.0
  %143 = vmatpush1.msra.mxu0 0.0
  %144 = vmatprep.subr.mxu0 0.0
  %145 = vmatpush1.msra.mxu0 0.0
  %146 = vmatprep.subr.mxu0 0.0
  %147 = vmatpush1.msra.mxu0 0.0
  %148 = vmatprep.subr.mxu0 0.0
  %149 = vmatpush1.msra.mxu0 0.0
  %150 = vmatprep.subr.mxu0 0.0
  %151 = vmatpush1.msra.mxu0 0.0
  %152 = vmatprep.subr.mxu0 0.0
  %153 = vmatpush1.msra.mxu0 0.0
  %154 = vmatprep.subr.mxu0 0.0
  %155 = vmatpush1.msra.mxu0 %v122
  %156 = vmatprep.subr.mxu0 0.0
  %157 = vmatpush2.msra.mxu0 0.0
  %158 = vmatprep.subr.mxu0 0.0
  %159 = vmatpush2.msra.mxu0 0.0
  %160 = vmatprep.subr.mxu0 0.0
  %161 = vmatpush2.msra.mxu0 0.0
  %162 = vmatprep.subr.mxu0 0.0
  %163 = vmatpush2.msra.mxu0 0.0
  %164 = vmatprep.subr.mxu0 0.0
  %165 = vmatpush2.msra.mxu0 0.0
  %166 = vmatprep.subr.mxu0 0.0
  %167 = vmatpush2.msra.mxu0 0.0
  %168 = vmatprep.subr.mxu0 0.0
  %169 = vmatpush2.msra.mxu0 0.0
  %170 = vmatprep.subr.mxu0 0.0
  %171 = vmatpush2.msra.mxu0 0.0
  %172 = vmatprep.subr.mxu0 0.0
  %173 = vmatpush2.msra.mxu0 0.0
  %174 = vmatprep.subr.mxu0 0.0
  %175 = vmatpush2.msra.mxu0 0.0
  %176 = vmatprep.subr.mxu0 0.0
  %177 = vmatpush2.msra.mxu0 0.0
  %178 = vmatprep.subr.mxu0 0.0
  %179 = vmatpush2.msra.mxu0 0.0
  %180 = vmatprep.subr.mxu0 0.0
  %181 = vmatpush2.msra.mxu0 0.0
  %182 = vmatprep.subr.mxu0 0.0
  %183 = vmatpush2.msra.mxu0 0.0
  %184 = vmatprep.subr.mxu0 0.0
  %185 = vmatpush2.msra.mxu0 0.0
  %186 = vmatprep.subr.mxu0 0.0
  %187 = vmatpush2.msra.mxu0 0.0
  %188 = vmatprep.mubr.f32.mxu0 0.0
  %189 = vmatmul.mubr.f32.gmra.mxu0 %v119
  %v190 = vpop.f32.mrf.mxu0
  %v191 = vadd.f32 0.0, %v190
  %v192 = vpop.f32.mrf.mxu0
  %193 = vdwg.mxu0
  %v195 = vsel %vm36, %v115, 0
  %v198 = vsel %vm40, %v116, 0
  %200 = vmatprep.subr.mxu0 0.0
  %201 = vmatpush1.msra.mxu0 0.0
  %202 = vmatprep.subr.mxu0 0.0
  %203 = vmatpush1.msra.mxu0 0.0
  %204 = vmatprep.subr.mxu0 0.0
  %205 = vmatpush1.msra.mxu0 0.0
  %206 = vmatprep.subr.mxu0 0.0
  %207 = vmatpush1.msra.mxu0 0.0
  %208 = vmatprep.subr.mxu0 0.0
  %209 = vmatpush1.msra.mxu0 0.0
  %210 = vmatprep.subr.mxu0 0.0
  %211 = vmatpush1.msra.mxu0 0.0
  %212 = vmatprep.subr.mxu0 0.0
  %213 = vmatpush1.msra.mxu0 0.0
  %214 = vmatprep.subr.mxu0 0.0
  %215 = vmatpush1.msra.mxu0 0.0
  %216 = vmatprep.subr.mxu0 0.0
  %217 = vmatpush1.msra.mxu0 0.0
  %218 = vmatprep.subr.mxu0 0.0
  %219 = vmatpush1.msra.mxu0 0.0
  %220 = vmatprep.subr.mxu0 0.0
  %221 = vmatpush1.msra.mxu0 0.0
  %222 = vmatprep.subr.mxu0 0.0
  %223 = vmatpush1.msra.mxu0 0.0
  %224 = vmatprep.subr.mxu0 0.0
  %225 = vmatpush1.msra.mxu0 0.0
  %226 = vmatprep.subr.mxu0 0.0
  %227 = vmatpush1.msra.mxu0 0.0
  %228 = vmatprep.subr.mxu0 0.0
  %229 = vmatpush1.msra.mxu0 0.0
  %230 = vmatprep.subr.mxu0 0.0
  %231 = vmatpush1.msra.mxu0 %v198
  %232 = vmatprep.subr.mxu0 0.0
  %233 = vmatpush2.msra.mxu0 0.0
  %234 = vmatprep.subr.mxu0 0.0
  %235 = vmatpush2.msra.mxu0 0.0
  %236 = vmatprep.subr.mxu0 0.0
  %237 = vmatpush2.msra.mxu0 0.0
  %238 = vmatprep.subr.mxu0 0.0
  %239 = vmatpush2.msra.mxu0 0.0
  %240 = vmatprep.subr.mxu0 0.0
  %241 = vmatpush2.msra.mxu0 0.0
  %242 = vmatprep.subr.mxu0 0.0
  %243 = vmatpush2.msra.mxu0 0.0
  %244 = vmatprep.subr.mxu0 0.0
  %245 = vmatpush2.msra.mxu0 0.0
  %246 = vmatprep.subr.mxu0 0.0
  %247 = vmatpush2.msra.mxu0 0.0
  %248 = vmatprep.subr.mxu0 0.0
  %249 = vmatpush2.msra.mxu0 0.0
  %250 = vmatprep.subr.mxu0 0.0
  %251 = vmatpush2.msra.mxu0 0.0
  %252 = vmatprep.subr.mxu0 0.0
  %253 = vmatpush2.msra.mxu0 0.0
  %254 = vmatprep.subr.mxu0 0.0
  %255 = vmatpush2.msra.mxu0 0.0
  %256 = vmatprep.subr.mxu0 0.0
  %257 = vmatpush2.msra.mxu0 0.0
  %258 = vmatprep.subr.mxu0 0.0
  %259 = vmatpush2.msra.mxu0 0.0
  %260 = vmatprep.subr.mxu0 0.0
  %261 = vmatpush2.msra.mxu0 0.0
  %262 = vmatprep.subr.mxu0 0.0
  %263 = vmatpush2.msra.mxu0 0.0
  %264 = vmatprep.mubr.f32.mxu0 0.0
  %265 = vmatmul.mubr.f32.gmra.mxu0 %v195
  %v266 = vpop.f32.mrf.mxu0
  %v267 = vadd.f32 %v191, %v266
  %v268 = vpop.f32.mrf.mxu0
  %269 = vdwg.mxu0
  %v270 = vlaneseq
  %v271 = vshrl.u32 %v270, 7
  %v272 = vsub.s32 0, %v271
  %v273 = vrot.slane %v29, %v272
  %v274 = vadd.f32 %v267, %v273
  %vm275 = vcmp.ge.f32.partialorder %v274, 0.0
  %v276 = vmul.f32 %v274, 0.01
  %v277 = vsel %vm275, %v274, %v276
  %v278 = vld [vmem:[%s5] sm:$0xff]
  %v279 = vld [vmem:[%s5 + $0x8] sm:$0xff]
  %v280 = vld [vmem:[%s5 + $0x10] sm:$0xff]
  %v281 = vld [vmem:[%s5 + $0x18] sm:$0xff]
  %v282 = vld [vmem:[%s5 + $0x20] sm:$0xff]
  %v283 = vld [vmem:[%s5 + $0x28] sm:$0xff]
  %v284 = vld [vmem:[%s5 + $0x30] sm:$0xff]
  %v285 = vld [vmem:[%s5 + $0x38] sm:$0xff]
  %v286 = vld [vmem:[%s5 + $0x40] sm:$0xff]
  %v287 = vld [vmem:[%s5 + $0x48] sm:$0xff]
  %v288 = vld [vmem:[%s5 + $0x50] sm:$0xff]
  %v289 = vld [vmem:[%s5 + $0x58] sm:$0xff]
  %v290 = vld [vmem:[%s5 + $0x60] sm:$0xf]
  %v291 = vlaneseq
  %v292 = vshrl.u32 %v291, 7
  %v293 = vsub.s32 1, %v292
  %v294 = vrot.slane %v29, %v293
  %vm295 = vcmask 818176
  %v297 = vsel %vm295, %v277, 0
  %vm299 = vcmask 1043456
  %v301 = vsel %vm299, %v290, 0
  %303 = vmatprep.subr.mxu0 0.0
  %304 = vmatpush1.msra.mxu0 0.0
  %305 = vmatprep.subr.mxu0 0.0
  %306 = vmatpush1.msra.mxu0 0.0
  %307 = vmatprep.subr.mxu0 0.0
  %308 = vmatpush1.msra.mxu0 0.0
  %309 = vmatprep.subr.mxu0 0.0
  %310 = vmatpush1.msra.mxu0 %v301
  %311 = vmatprep.subr.mxu0 0.0
  %312 = vmatpush1.msra.mxu0 %v289
  %313 = vmatprep.subr.mxu0 0.0
  %314 = vmatpush1.msra.mxu0 %v288
  %315 = vmatprep.subr.mxu0 0.0
  %316 = vmatpush1.msra.mxu0 %v287
  %317 = vmatprep.subr.mxu0 0.0
  %318 = vmatpush1.msra.mxu0 %v286
  %319 = vmatprep.subr.mxu0 0.0
  %320 = vmatpush1.msra.mxu0 %v285
  %321 = vmatprep.subr.mxu0 0.0
  %322 = vmatpush1.msra.mxu0 %v284
  %323 = vmatprep.subr.mxu0 0.0
  %324 = vmatpush1.msra.mxu0 %v283
  %325 = vmatprep.subr.mxu0 0.0
  %326 = vmatpush1.msra.mxu0 %v282
  %327 = vmatprep.subr.mxu0 0.0
  %328 = vmatpush1.msra.mxu0 %v281
  %329 = vmatprep.subr.mxu0 0.0
  %330 = vmatpush1.msra.mxu0 %v280
  %331 = vmatprep.subr.mxu0 0.0
  %332 = vmatpush1.msra.mxu0 %v279
  %333 = vmatprep.subr.mxu0 0.0
  %334 = vmatpush1.msra.mxu0 %v278
  %335 = vmatprep.subr.mxu0 0.0
  %336 = vmatpush2.msra.mxu0 0.0
  %337 = vmatprep.subr.mxu0 0.0
  %338 = vmatpush2.msra.mxu0 0.0
  %339 = vmatprep.subr.mxu0 0.0
  %340 = vmatpush2.msra.mxu0 0.0
  %341 = vmatprep.subr.mxu0 0.0
  %342 = vmatpush2.msra.mxu0 0.0
  %343 = vmatprep.subr.mxu0 0.0
  %344 = vmatpush2.msra.mxu0 0.0
  %345 = vmatprep.subr.mxu0 0.0
  %346 = vmatpush2.msra.mxu0 0.0
  %347 = vmatprep.subr.mxu0 0.0
  %348 = vmatpush2.msra.mxu0 0.0
  %349 = vmatprep.subr.mxu0 0.0
  %350 = vmatpush2.msra.mxu0 0.0
  %351 = vmatprep.subr.mxu0 0.0
  %352 = vmatpush2.msra.mxu0 0.0
  %353 = vmatprep.subr.mxu0 0.0
  %354 = vmatpush2.msra.mxu0 0.0
  %355 = vmatprep.subr.mxu0 0.0
  %356 = vmatpush2.msra.mxu0 0.0
  %357 = vmatprep.subr.mxu0 0.0
  %358 = vmatpush2.msra.mxu0 0.0
  %359 = vmatprep.subr.mxu0 0.0
  %360 = vmatpush2.msra.mxu0 0.0
  %361 = vmatprep.subr.mxu0 0.0
  %362 = vmatpush2.msra.mxu0 0.0
  %363 = vmatprep.subr.mxu0 0.0
  %364 = vmatpush2.msra.mxu0 0.0
  %365 = vmatprep.subr.mxu0 0.0
  %366 = vmatpush2.msra.mxu0 0.0
  %367 = vmatprep.mubr.f32.mxu0 0.0
  %368 = vmatmul.mubr.f32.gmra.mxu0 %v297
  %v369 = vpop.f32.mrf.mxu0
  %v370 = vadd.f32 %v294, %v369
  %v371 = vpop.f32.mrf.mxu0
  %372 = vdwg.mxu0
  %vm373 = vcmp.ge.f32.partialorder %v370, 0.0
  %v374 = vmul.f32 %v370, 0.01
  %v375 = vsel %vm373, %v370, %v374
  %v376 = vld [vmem:[%s6] sm:$0xff]
  %v377 = vld [vmem:[%s6 + $0x8] sm:$0xff]
  %v378 = vld [vmem:[%s6 + $0x10] sm:$0xff]
  %v379 = vld [vmem:[%s6 + $0x18] sm:$0xff]
  %v380 = vld [vmem:[%s6 + $0x20] sm:$0xff]
  %v381 = vlaneseq
  %v382 = vshrl.u32 %v381, 7
  %v383 = vsub.s32 3, %v382
  %v384 = vrot.slane %v29, %v383
  %vm385 = vcmask 326656
  %v387 = vsel %vm385, %v375, 0
  %389 = vmatprep.subr.mxu0 0.0
  %390 = vmatpush1.msra.mxu0 0.0
  %391 = vmatprep.subr.mxu0 0.0
  %392 = vmatpush1.msra.mxu0 0.0
  %393 = vmatprep.subr.mxu0 0.0
  %394 = vmatpush1.msra.mxu0 0.0
  %395 = vmatprep.subr.mxu0 0.0
  %396 = vmatpush1.msra.mxu0 0.0
  %397 = vmatprep.subr.mxu0 0.0
  %398 = vmatpush1.msra.mxu0 0.0
  %399 = vmatprep.subr.mxu0 0.0
  %400 = vmatpush1.msra.mxu0 0.0
  %401 = vmatprep.subr.mxu0 0.0
  %402 = vmatpush1.msra.mxu0 0.0
  %403 = vmatprep.subr.mxu0 0.0
  %404 = vmatpush1.msra.mxu0 0.0
  %405 = vmatprep.subr.mxu0 0.0
  %406 = vmatpush1.msra.mxu0 0.0
  %407 = vmatprep.subr.mxu0 0.0
  %408 = vmatpush1.msra.mxu0 0.0
  %409 = vmatprep.subr.mxu0 0.0
  %410 = vmatpush1.msra.mxu0 0.0
  %411 = vmatprep.subr.mxu0 0.0
  %412 = vmatpush1.msra.mxu0 %v380
  %413 = vmatprep.subr.mxu0 0.0
  %414 = vmatpush1.msra.mxu0 %v379
  %415 = vmatprep.subr.mxu0 0.0
  %416 = vmatpush1.msra.mxu0 %v378
  %417 = vmatprep.subr.mxu0 0.0
  %418 = vmatpush1.msra.mxu0 %v377
  %419 = vmatprep.subr.mxu0 0.0
  %420 = vmatpush1.msra.mxu0 %v376
  %421 = vmatprep.subr.mxu0 0.0
  %422 = vmatpush2.msra.mxu0 0.0
  %423 = vmatprep.subr.mxu0 0.0
  %424 = vmatpush2.msra.mxu0 0.0
  %425 = vmatprep.subr.mxu0 0.0
  %426 = vmatpush2.msra.mxu0 0.0
  %427 = vmatprep.subr.mxu0 0.0
  %428 = vmatpush2.msra.mxu0 0.0
  %429 = vmatprep.subr.mxu0 0.0
  %430 = vmatpush2.msra.mxu0 0.0
  %431 = vmatprep.subr.mxu0 0.0
  %432 = vmatpush2.msra.mxu0 0.0
  %433 = vmatprep.subr.mxu0 0.0
  %434 = vmatpush2.msra.mxu0 0.0
  %435 = vmatprep.subr.mxu0 0.0
  %436 = vmatpush2.msra.mxu0 0.0
  %437 = vmatprep.subr.mxu0 0.0
  %438 = vmatpush2.msra.mxu0 0.0
  %439 = vmatprep.subr.mxu0 0.0
  %440 = vmatpush2.msra.mxu0 0.0
  %441 = vmatprep.subr.mxu0 0.0
  %442 = vmatpush2.msra.mxu0 0.0
  %443 = vmatprep.subr.mxu0 0.0
  %444 = vmatpush2.msra.mxu0 0.0
  %445 = vmatprep.subr.mxu0 0.0
  %446 = vmatpush2.msra.mxu0 0.0
  %447 = vmatprep.subr.mxu0 0.0
  %448 = vmatpush2.msra.mxu0 0.0
  %449 = vmatprep.subr.mxu0 0.0
  %450 = vmatpush2.msra.mxu0 0.0
  %451 = vmatprep.subr.mxu0 0.0
  %452 = vmatpush2.msra.mxu0 0.0
  %453 = vmatprep.mubr.f32.mxu0 0.0
  %454 = vmatmul.mubr.f32.gmra.mxu0 %v387
  %v455 = vpop.f32.mrf.mxu0
  %v456 = vadd.f32 %v384, %v455
  %v457 = vpop.f32.mrf.mxu0
  %458 = vdwg.mxu0
  %vm459 = vcmask 7168
  %460 = vst.msk [vmem:[%s8] sm:$0xff] %vm459, %v456
  // Predicated region
  $region34: #{tpu_custom_call.1} parent=0 // pred_check
    _
  $region35: #{tpu_custom_call.1} parent=0 // pred_check_branch
    %462 = sbr.rel (0) target = $region37
  $region36: #{tpu_custom_call.1} parent=0 // pred_region
    _
  $region37: #{tpu_custom_call.1} parent=0 // pred_fallthru
    _
  // Predicated region
  $region38: #{tpu_custom_call.1} parent=0 // pred_check
    _
  $region39: #{tpu_custom_call.1} parent=0 // pred_check_branch
    %464 = sbr.rel (0) target = $region41
  $region40: #{tpu_custom_call.1} parent=0 // pred_region
    _
  $region41: #{tpu_custom_call.1} parent=0 // pred_fallthru
    _

</llo_original>
